<compile_context>
chip_gen: v7x
topology: tpu7x:2x2x1
jax: 0.10.0
libtpu: 0.0.40
codegen_flags: <defaults>
</compile_context>

<pallas_src>
import functools

import jax
import jax.numpy as jnp
from jax.experimental import pallas as pl
from jax.experimental.pallas import tpu as pltpu

LANE = 128      # lane width: pad feature dims to this
SUBLANE = 16    # bf16 min tile is (16, 128): pad node count to a multiple of 16


def _round_up(n, m):
    return ((n + m - 1) // m) * m


def _pad2d(x, rows, cols):
    r, c = x.shape
    return jnp.pad(x, ((0, rows - r), (0, cols - c)))


def _sage_layer(a, inv_deg, x_bf, x_f32, w_packed, b, *, f_in, relu):
    """One SAGEConv on VMEM-resident tiles; 2 MXU matmuls, f32 accumulation.

    a:        [Np, Np] bf16 integer edge counts (exact in bf16)
    inv_deg:  [Np, 1]  f32 reciprocal in-degree (0 for isolated / padded rows)
    x_bf/x_f32: node features, nonzero only in lanes 0..f_in-1
    w_packed: [128, 128] bf16, rows 0..f_in-1 = W_l, rows f_in..2f_in-1 = W_r
    """
    # Neighbor mean: f32 degree scale on the VPU (co-issues with MXU/DMA work).
    agg = inv_deg * jnp.dot(a, x_bf, preferred_element_type=jnp.float32)
    # Pack [agg | x] into disjoint lane ranges (XLU roll; no overlap since
    # 2*f_in <= 128 and both operands are zero outside their f_in lanes).
    packed = (agg + pltpu.roll(x_f32, shift=f_in, axis=1)).astype(jnp.bfloat16)
    # Fused lin_l + lin_r: one matmul against the stacked weight.
    out = jnp.dot(packed, w_packed, preferred_element_type=jnp.float32) + b
    if relu:
        out = jnp.maximum(out, 0.0)
    return out


def _graphsage2_kernel(a_ref, deg_ref, x_ref, w1_ref, b1_ref, w2_ref, b2_ref,
                       o_ref, *, f_in1, f_in2):
    a = a_ref[...]                                   # [Np, Np] bf16 edge counts
    inv_deg = deg_ref[...]                           # [Np, 1]  f32 1/deg
    x_bf = x_ref[...]                                # [Np, 128] bf16 features
    x_f32 = x_bf.astype(jnp.float32)

    # Layer 1: SAGEConv + ReLU
    h = _sage_layer(a, inv_deg, x_bf, x_f32, w1_ref[...], b1_ref[...],
                    f_in=f_in1, relu=True)
    # TODO(synk): F.dropout with training=True not implemented; eval-mode (identity) semantics.
    h_bf = h.astype(jnp.bfloat16)

    # Layer 2: SAGEConv (no activation)
    out = _sage_layer(a, inv_deg, h_bf, h, w2_ref[...], b2_ref[...],
                      f_in=f_in2, relu=False)
    o_ref[...] = out.astype(o_ref.dtype)             # [Np, 128] lane-dense store


def _pack_w(w_l, w_r):
    """Stack W_l / W_r into one [128, 128] bf16 weight for the fused matmul."""
    f_in, f_out = w_l.shape
    assert 2 * f_in <= LANE and f_out <= LANE
    w = jnp.zeros((LANE, LANE), jnp.float32)
    w = w.at[:f_in, :f_out].set(w_l)
    w = w.at[f_in:2 * f_in, :f_out].set(w_r)
    return w.astype(jnp.bfloat16)


def _pad_b(b):
    return jnp.pad(b, (0, LANE - b.shape[0])).reshape(1, LANE).astype(jnp.float32)


def build_graph_inputs(edge_index, num_nodes):
    """Precompute the padded bf16 adjacency (edge counts) and f32 1/deg once per graph.

    edge_index: [2, E] int array, row 0 = source, row 1 = target (messages flow
    source -> target, aggregated at the target, PyG convention).  Edge counts
    are small integers, exactly representable in bf16; the mean weights are
    applied later in f32 inside the kernel.
    """
    n_p = _round_up(num_nodes, SUBLANE)
    src, dst = edge_index[0], edge_index[1]
    a = jnp.zeros((num_nodes, num_nodes), jnp.float32).at[dst, src].add(1.0)
    deg = a.sum(axis=1)
    inv_deg = jnp.where(deg > 0, 1.0 / deg, 0.0)   # isolated nodes aggregate to 0 (PyG behavior)
    a_p = _pad2d(a, n_p, n_p).astype(jnp.bfloat16)
    inv_deg_p = jnp.pad(inv_deg, (0, n_p - num_nodes)).reshape(n_p, 1).astype(jnp.float32)
    return a_p, inv_deg_p


def graphsage_forward(x, a_counts, inv_deg, params):
    """Fused 2-layer GraphSAGE forward (eval mode). params = [(W_l, W_r, b)] x 2."""
    assert len(params) == 2, "fused kernel implements the default num_layers=2"
    n, f_in = x.shape
    hid = params[0][0].shape[1]
    f_out = params[1][0].shape[1]
    n_p = a_counts.shape[0]
    assert 2 * f_in <= LANE and 2 * hid <= LANE and f_out <= LANE

    x_p = _pad2d(x, n_p, LANE).astype(jnp.bfloat16)
    (w1l, w1r, b1), (w2l, w2r, b2) = params

    kernel = functools.partial(_graphsage2_kernel, f_in1=f_in, f_in2=hid)

    # 2 matmuls per layer: [Np,Np]x[Np,128] and [Np,128]x[128,128].
    flops = 2 * (2 * n_p * n_p * LANE + 2 * n_p * LANE * LANE)
    bytes_accessed = (2 * n_p * n_p            # A (bf16)
                      + 2 * n_p * LANE         # X (bf16)
                      + 4 * n_p * LANE         # out (f32)
                      + 4 * n_p                # inv_deg (f32)
                      + 2 * (2 * LANE * LANE + 4 * LANE))  # weights + biases

    out_p = pl.pallas_call(
        kernel,
        out_shape=jax.ShapeDtypeStruct((n_p, LANE), jnp.float32),
        in_specs=[pl.BlockSpec(memory_space=pltpu.MemorySpace.VMEM)] * 7,
        out_specs=pl.BlockSpec(memory_space=pltpu.MemorySpace.VMEM),
        cost_estimate=pl.CostEstimate(flops=flops, transcendentals=0,
                                      bytes_accessed=bytes_accessed),
    )(a_counts, inv_deg, x_p, _pack_w(w1l, w1r), _pad_b(b1),
      _pack_w(w2l, w2r), _pad_b(b2))

    return out_p[:n, :f_out]


def init_graphsage_params(key, input_dim, hidden_dim, output_dim, num_layers=2):
    """Deterministic parameter init. Each layer: (W_l [Fin,Fout], W_r [Fin,Fout], b [Fout])."""
    dims = [input_dim] + [hidden_dim] * (num_layers - 1) + [output_dim]
    params = []
    for i in range(num_layers):
        f_in, f_out = dims[i], dims[i + 1]
        key, k1, k2 = jax.random.split(key, 3)
        scale = 1.0 / jnp.sqrt(jnp.float32(f_in))
        w_l = jax.random.uniform(k1, (f_in, f_out), jnp.float32, -scale, scale)
        w_r = jax.random.uniform(k2, (f_in, f_out), jnp.float32, -scale, scale)
        b = jnp.zeros((f_out,), jnp.float32)
        params.append((w_l, w_r, b))
    return params


if __name__ == "__main__":
    # Small synthetic graph consistent with GraphSAGE(input_dim, hidden_dim, output_dim)
    num_nodes = 128
    num_edges = 512
    input_dim, hidden_dim, output_dim = 16, 32, 8

    key = jax.random.PRNGKey(0)
    kx, ke_src, ke_dst, kp = jax.random.split(key, 4)

    x = jax.random.normal(kx, (num_nodes, input_dim), jnp.float32)
    edge_index = jnp.stack([
        jax.random.randint(ke_src, (num_edges,), 0, num_nodes),
        jax.random.randint(ke_dst, (num_edges,), 0, num_nodes),
    ], axis=0).astype(jnp.int32)

    params = init_graphsage_params(kp, input_dim, hidden_dim, output_dim, num_layers=2)

    # Graph-dependent operands are built (padded + bf16-cast) once and reused;
    # the forward is jitted so the X pad/cast folds around the fused kernel.
    a_counts, inv_deg = build_graph_inputs(edge_index, num_nodes)
    forward = jax.jit(graphsage_forward)

    out = forward(x, a_counts, inv_deg, params)
    out = jax.block_until_ready(out)
    assert out.shape == (num_nodes, output_dim)
    print("KERNEL_OK")
</pallas_src>

<mosaic_0001>
module attributes {stable_mosaic.version = 11 : i64} {
  func.func @_graphsage2_kernel(%arg0: memref<128x128xbf16, #tpu.memory_space<vmem>>, %arg1: memref<128x1xf32, #tpu.memory_space<vmem>>, %arg2: memref<128x128xbf16, #tpu.memory_space<vmem>>, %arg3: memref<128x128xbf16, #tpu.memory_space<vmem>>, %arg4: memref<1x128xf32, #tpu.memory_space<vmem>>, %arg5: memref<128x128xbf16, #tpu.memory_space<vmem>>, %arg6: memref<1x128xf32, #tpu.memory_space<vmem>>, %arg7: memref<128x128xf32, #tpu.memory_space<vmem>>) attributes {dimension_semantics = [], scalar_prefetch = 0 : i64, scratch_operands = 0 : i64, tpu.core_type = #tpu.core_type<tc>} {
    %c0 = arith.constant 0 : index
    %c0_0 = arith.constant 0 : index
    %0 = vector.load %arg0[%c0, %c0_0] : memref<128x128xbf16, #tpu.memory_space<vmem>>, vector<128x128xbf16>
    %c0_1 = arith.constant 0 : index
    %c0_2 = arith.constant 0 : index
    %1 = vector.load %arg1[%c0_1, %c0_2] : memref<128x1xf32, #tpu.memory_space<vmem>>, vector<128x1xf32>
    %c0_3 = arith.constant 0 : index
    %c0_4 = arith.constant 0 : index
    %2 = vector.load %arg2[%c0_3, %c0_4] : memref<128x128xbf16, #tpu.memory_space<vmem>>, vector<128x128xbf16>
    %3 = arith.extf %2 : vector<128x128xbf16> to vector<128x128xf32>
    %c0_5 = arith.constant 0 : index
    %c0_6 = arith.constant 0 : index
    %4 = vector.load %arg3[%c0_5, %c0_6] : memref<128x128xbf16, #tpu.memory_space<vmem>>, vector<128x128xbf16>
    %c0_7 = arith.constant 0 : index
    %c0_8 = arith.constant 0 : index
    %5 = vector.load %arg4[%c0_7, %c0_8] : memref<1x128xf32, #tpu.memory_space<vmem>>, vector<1x128xf32>
    %cst = arith.constant dense<0.000000e+00> : vector<128x128xf32>
    %6 = tpu.matmul %0, %2, %cst {dimension_numbers = #tpu.dot_dimension_numbers<[1], [0], [0], [1], [0, 0, 1, 1], [], []>} : vector<128x128xbf16>, vector<128x128xbf16>, vector<128x128xf32> -> vector<128x128xf32>
    %7 = vector.broadcast %1 : vector<128x1xf32> to vector<128x128xf32>
    %8 = arith.mulf %7, %6 : vector<128x128xf32>
    %c16_i32 = arith.constant 16 : i32
    %9 = tpu.dynamic_rotate %3 by %c16_i32 dim 1 : vector<128x128xf32>, i32 -> vector<128x128xf32>
    %10 = arith.addf %8, %9 : vector<128x128xf32>
    %11 = arith.truncf %10 : vector<128x128xf32> to vector<128x128xbf16>
    %cst_9 = arith.constant dense<0.000000e+00> : vector<128x128xf32>
    %12 = tpu.matmul %11, %4, %cst_9 {dimension_numbers = #tpu.dot_dimension_numbers<[1], [0], [0], [1], [0, 0, 1, 1], [], []>} : vector<128x128xbf16>, vector<128x128xbf16>, vector<128x128xf32> -> vector<128x128xf32>
    %13 = vector.broadcast %5 : vector<1x128xf32> to vector<128x128xf32>
    %14 = arith.addf %12, %13 : vector<128x128xf32>
    %cst_10 = arith.constant 0.000000e+00 : f32
    %15 = vector.broadcast %cst_10 : f32 to vector<128x128xf32>
    %16 = arith.maximumf %14, %15 : vector<128x128xf32>
    %17 = arith.truncf %16 : vector<128x128xf32> to vector<128x128xbf16>
    %c0_11 = arith.constant 0 : index
    %c0_12 = arith.constant 0 : index
    %18 = vector.load %arg5[%c0_11, %c0_12] : memref<128x128xbf16, #tpu.memory_space<vmem>>, vector<128x128xbf16>
    %c0_13 = arith.constant 0 : index
    %c0_14 = arith.constant 0 : index
    %19 = vector.load %arg6[%c0_13, %c0_14] : memref<1x128xf32, #tpu.memory_space<vmem>>, vector<1x128xf32>
    %cst_15 = arith.constant dense<0.000000e+00> : vector<128x128xf32>
    %20 = tpu.matmul %0, %17, %cst_15 {dimension_numbers = #tpu.dot_dimension_numbers<[1], [0], [0], [1], [0, 0, 1, 1], [], []>} : vector<128x128xbf16>, vector<128x128xbf16>, vector<128x128xf32> -> vector<128x128xf32>
    %21 = vector.broadcast %1 : vector<128x1xf32> to vector<128x128xf32>
    %22 = arith.mulf %21, %20 : vector<128x128xf32>
    %c32_i32 = arith.constant 32 : i32
    %23 = tpu.dynamic_rotate %16 by %c32_i32 dim 1 : vector<128x128xf32>, i32 -> vector<128x128xf32>
    %24 = arith.addf %22, %23 : vector<128x128xf32>
    %25 = arith.truncf %24 : vector<128x128xf32> to vector<128x128xbf16>
    %cst_16 = arith.constant dense<0.000000e+00> : vector<128x128xf32>
    %26 = tpu.matmul %25, %18, %cst_16 {dimension_numbers = #tpu.dot_dimension_numbers<[1], [0], [0], [1], [0, 0, 1, 1], [], []>} : vector<128x128xbf16>, vector<128x128xbf16>, vector<128x128xf32> -> vector<128x128xf32>
    %27 = vector.broadcast %19 : vector<1x128xf32> to vector<128x128xf32>
    %28 = arith.addf %26, %27 : vector<128x128xf32>
    %c0_17 = arith.constant 0 : index
    %c0_18 = arith.constant 0 : index
    %29 = vector.load %arg7[%c0_17, %c0_18] : memref<128x128xf32, #tpu.memory_space<vmem>>, vector<128x128xf32>
    tpu.vector_store %arg7[%c0_17, %c0_18], %28 {strides = array<i32>} : memref<128x128xf32, #tpu.memory_space<vmem>>, vector<128x128xf32>,
    return
  }
}

</mosaic_0001>

<llo_original>
// kernel: graphsage_forward.1
$region0: #{graphsage_forward.1}
  #allocation0 [shape = 'u32[]', space=smem, size = 0x4, offset = 0x4, fixed_abs, tag = 'smem constant byte address 0x4 - core index']
  #allocation1 [shape = 'u32[144,128]{1,0:T(1,128)}', space=vmem, size = 0x12000, scoped, tag = 'internal scratch']
  %s0 = inlined_call_operand.vmem [shape: bf16[128,128], index: 0, kind: input, shape index: {}]
  %s1 = inlined_call_operand.vmem [shape: f32[128,1], index: 1, kind: input, shape index: {}]
  %s2 = inlined_call_operand.vmem [shape: bf16[128,128], index: 2, kind: input, shape index: {}]
  %s3 = inlined_call_operand.vmem [shape: bf16[128,128], index: 3, kind: input, shape index: {}]
  %s4 = inlined_call_operand.vmem [shape: f32[1,128], index: 4, kind: input, shape index: {}]
  %s5 = inlined_call_operand.vmem [shape: bf16[128,128], index: 5, kind: input, shape index: {}]
  %s6 = inlined_call_operand.vmem [shape: f32[1,128], index: 6, kind: input, shape index: {}]
  %s7 = inlined_call_operand.vmem [shape: f32[128,128], index: 7, kind: output, shape index: {}]
  %s8 = sld [smem:[#allocation0]]
  $region38: #{graphsage_forward.1} parent=0
    _
  %s10 = ssub.s32 1, %s8
  %s11 = scalar_select 0, %s10, %s8
  // Predicated region
  $region2: #{graphsage_forward.1} parent=0 // pred_check
    _
  $region3: #{graphsage_forward.1} parent=0 // pred_check_branch
    %13 = sbr.rel (0) target = $region5
  $region4: #{graphsage_forward.1} parent=0 // pred_region
    _
  $region5: #{graphsage_forward.1} parent=0 // pred_fallthru
    _
  // Predicated region
  $region6: #{graphsage_forward.1} parent=0 // pred_check
    _
  $region7: #{graphsage_forward.1} parent=0 // pred_check_branch
    %15 = sbr.rel (0) target = $region9
  $region8: #{graphsage_forward.1} parent=0 // pred_region
    _
  $region9: #{graphsage_forward.1} parent=0 // pred_fallthru
    _
  // Predicated region
  $region10: #{graphsage_forward.1} parent=0 // pred_check
    _
  $region11: #{graphsage_forward.1} parent=0 // pred_check_branch
    %17 = sbr.rel (0) target = $region13
  $region12: #{graphsage_forward.1} parent=0 // pred_region
    _
  $region13: #{graphsage_forward.1} parent=0 // pred_fallthru
    _
  // Predicated region
  $region14: #{graphsage_forward.1} parent=0 // pred_check
    _
  $region15: #{graphsage_forward.1} parent=0 // pred_check_branch
    %19 = sbr.rel (0) target = $region17
  $region16: #{graphsage_forward.1} parent=0 // pred_region
    _
  $region17: #{graphsage_forward.1} parent=0 // pred_fallthru
    _
  // Predicated region
  $region18: #{graphsage_forward.1} parent=0 // pred_check
    _
  $region19: #{graphsage_forward.1} parent=0 // pred_check_branch
    %21 = sbr.rel (0) target = $region21
  $region20: #{graphsage_forward.1} parent=0 // pred_region
    _
  $region21: #{graphsage_forward.1} parent=0 // pred_fallthru
    _
  // Predicated region
  $region22: #{graphsage_forward.1} parent=0 // pred_check
    _
  $region23: #{graphsage_forward.1} parent=0 // pred_check_branch
    %23 = sbr.rel (0) target = $region25
  $region24: #{graphsage_forward.1} parent=0 // pred_region
    _
  $region25: #{graphsage_forward.1} parent=0 // pred_fallthru
    _
  // Predicated region
  $region26: #{graphsage_forward.1} parent=0 // pred_check
    _
  $region27: #{graphsage_forward.1} parent=0 // pred_check_branch
    %25 = sbr.rel (0) target = $region29
  $region28: #{graphsage_forward.1} parent=0 // pred_region
    _
  $region29: #{graphsage_forward.1} parent=0 // pred_fallthru
    _
  %v27 = vld [vmem:[%s0] sm:$0xf]
  %v28 = vld [vmem:[%s0 + $0x4] sm:$0xf]
  %v29 = vld [vmem:[%s0 + $0x8] sm:$0xf]
  %v30 = vld [vmem:[%s0 + $0xc] sm:$0xf]
  %v31 = vld [vmem:[%s0 + $0x10] sm:$0xf]
  %v32 = vld [vmem:[%s0 + $0x14] sm:$0xf]
  %v33 = vld [vmem:[%s0 + $0x18] sm:$0xf]
  %v34 = vld [vmem:[%s0 + $0x1c] sm:$0xf]
  %v35 = vld [vmem:[%s0 + $0x20] sm:$0xf]
  %v36 = vld [vmem:[%s0 + $0x24] sm:$0xf]
  %v37 = vld [vmem:[%s0 + $0x28] sm:$0xf]
  %v38 = vld [vmem:[%s0 + $0x2c] sm:$0xf]
  %v39 = vld [vmem:[%s0 + $0x30] sm:$0xf]
  %v40 = vld [vmem:[%s0 + $0x34] sm:$0xf]
  %v41 = vld [vmem:[%s0 + $0x38] sm:$0xf]
  %v42 = vld [vmem:[%s0 + $0x3c] sm:$0xf]
  %v43 = vld [vmem:[%s1] sm:$0xff]
  %v44 = vld [vmem:[%s1 + $0x8] sm:$0xff]
  %v45 = vld [vmem:[%s1 + $0x10] sm:$0xff]
  %v46 = vld [vmem:[%s1 + $0x18] sm:$0xff]
  %v47 = vld [vmem:[%s1 + $0x20] sm:$0xff]
  %v48 = vld [vmem:[%s1 + $0x28] sm:$0xff]
  %v49 = vld [vmem:[%s1 + $0x30] sm:$0xff]
  %v50 = vld [vmem:[%s1 + $0x38] sm:$0xff]
  %v51 = vld [vmem:[%s1 + $0x40] sm:$0xff]
  %v52 = vld [vmem:[%s1 + $0x48] sm:$0xff]
  %v53 = vld [vmem:[%s1 + $0x50] sm:$0xff]
  %v54 = vld [vmem:[%s1 + $0x58] sm:$0xff]
  %v55 = vld [vmem:[%s1 + $0x60] sm:$0xff]
  %v56 = vld [vmem:[%s1 + $0x68] sm:$0xff]
  %v57 = vld [vmem:[%s1 + $0x70] sm:$0xff]
  %v58 = vld [vmem:[%s1 + $0x78] sm:$0xff]
  %v59 = vld [vmem:[%s2] sm:$0xf]
  %v60 = vld [vmem:[%s2 + $0x4] sm:$0xf]
  %v61 = vld [vmem:[%s2 + $0x8] sm:$0xf]
  %v62 = vld [vmem:[%s2 + $0xc] sm:$0xf]
  %v63 = vld [vmem:[%s2 + $0x10] sm:$0xf]
  %v64 = vld [vmem:[%s2 + $0x14] sm:$0xf]
  %v65 = vld [vmem:[%s2 + $0x18] sm:$0xf]
  %v66 = vld [vmem:[%s2 + $0x1c] sm:$0xf]
  %v67 = vld [vmem:[%s2 + $0x20] sm:$0xf]
  %v68 = vld [vmem:[%s2 + $0x24] sm:$0xf]
  %v69 = vld [vmem:[%s2 + $0x28] sm:$0xf]
  %v70 = vld [vmem:[%s2 + $0x2c] sm:$0xf]
  %v71 = vld [vmem:[%s2 + $0x30] sm:$0xf]
  %v72 = vld [vmem:[%s2 + $0x34] sm:$0xf]
  %v73 = vld [vmem:[%s2 + $0x38] sm:$0xf]
  %v74 = vld [vmem:[%s2 + $0x3c] sm:$0xf]
  %v75 = vunpack.c.l.bf16 %v59
  %v76 = vunpack.c.l.bf16 %v60
  %v77 = vunpack.c.l.bf16 %v61
  %v78 = vunpack.c.l.bf16 %v62
  %v79 = vunpack.c.l.bf16 %v63
  %v80 = vunpack.c.l.bf16 %v64
  %v81 = vunpack.c.l.bf16 %v65
  %v82 = vunpack.c.l.bf16 %v66
  %v83 = vunpack.c.l.bf16 %v67
  %v84 = vunpack.c.l.bf16 %v68
  %v85 = vunpack.c.l.bf16 %v69
  %v86 = vunpack.c.l.bf16 %v70
  %v87 = vunpack.c.l.bf16 %v71
  %v88 = vunpack.c.l.bf16 %v72
  %v89 = vunpack.c.l.bf16 %v73
  %v90 = vunpack.c.l.bf16 %v74
  %v91 = vld [vmem:[%s3] sm:$0xf]
  %v92 = vld [vmem:[%s3 + $0x4] sm:$0xf]
  %v93 = vld [vmem:[%s3 + $0x8] sm:$0xf]
  %v94 = vld [vmem:[%s3 + $0xc] sm:$0xf]
  %v95 = vld [vmem:[%s3 + $0x10] sm:$0xf]
  %v96 = vld [vmem:[%s3 + $0x14] sm:$0xf]
  %v97 = vld [vmem:[%s3 + $0x18] sm:$0xf]
  %v98 = vld [vmem:[%s3 + $0x1c] sm:$0xf]
  %v99 = vld [vmem:[%s3 + $0x20] sm:$0xf]
  %v100 = vld [vmem:[%s3 + $0x24] sm:$0xf]
  %v101 = vld [vmem:[%s3 + $0x28] sm:$0xf]
  %v102 = vld [vmem:[%s3 + $0x2c] sm:$0xf]
  %v103 = vld [vmem:[%s3 + $0x30] sm:$0xf]
  %v104 = vld [vmem:[%s3 + $0x34] sm:$0xf]
  %v105 = vld [vmem:[%s3 + $0x38] sm:$0xf]
  %v106 = vld [vmem:[%s3 + $0x3c] sm:$0xf]
  %v107 = vld [vmem:[%s4] sm:$0x1]
  %v124 = vunpack.c.l.b16 %v27
  %v125 = vunpack.c.l.b16 %v28
  %v126 = vunpack.c.l.b16 %v29
  %v127 = vunpack.c.l.b16 %v30
  %v128 = vunpack.c.l.b16 %v31
  %v129 = vunpack.c.l.b16 %v32
  %v130 = vunpack.c.l.b16 %v33
  %v131 = vunpack.c.l.b16 %v34
  %v132 = vunpack.c.l.b16 %v35
  %v133 = vunpack.c.l.b16 %v36
  %v134 = vunpack.c.l.b16 %v37
  %v135 = vunpack.c.l.b16 %v38
  %v136 = vunpack.c.l.b16 %v39
  %v137 = vunpack.c.l.b16 %v40
  %v138 = vunpack.c.l.b16 %v41
  %v139 = vunpack.c.l.b16 %v42
  %v140 = vpack.c.b16 %v125, %v124
  %v141 = vpack.c.b16 %v127, %v126
  %v142 = vpack.c.b16 %v129, %v128
  %v143 = vpack.c.b16 %v131, %v130
  %v144 = vpack.c.b16 %v133, %v132
  %v145 = vpack.c.b16 %v135, %v134
  %v146 = vpack.c.b16 %v137, %v136
  %v147 = vpack.c.b16 %v139, %v138
  %v172 = vunpack.c.l.b16 %v59
  %v173 = vunpack.c.l.b16 %v60
  %v174 = vunpack.c.l.b16 %v61
  %v175 = vunpack.c.l.b16 %v62
  %v176 = vunpack.c.l.b16 %v63
  %v177 = vunpack.c.l.b16 %v64
  %v178 = vunpack.c.l.b16 %v65
  %v179 = vunpack.c.l.b16 %v66
  %v180 = vunpack.c.l.b16 %v67
  %v181 = vunpack.c.l.b16 %v68
  %v182 = vunpack.c.l.b16 %v69
  %v183 = vunpack.c.l.b16 %v70
  %v184 = vunpack.c.l.b16 %v71
  %v185 = vunpack.c.l.b16 %v72
  %v186 = vunpack.c.l.b16 %v73
  %v187 = vunpack.c.l.b16 %v74
  %v188 = vpack.c.b16 %v173, %v172
  %v189 = vpack.c.b16 %v175, %v174
  %v190 = vpack.c.b16 %v177, %v176
  %v191 = vpack.c.b16 %v179, %v178
  %v192 = vpack.c.b16 %v181, %v180
  %v193 = vpack.c.b16 %v183, %v182
  %v194 = vpack.c.b16 %v185, %v184
  %v195 = vpack.c.b16 %v187, %v186
  %204 = vmatprep.subr.bf16.mxu0 0
  %205 = vmatpush1.bf16.msra.mxu0 %v188
  %206 = vmatprep.subr.bf16.mxu0 0
  %207 = vmatpush1.bf16.msra.mxu0 %v189
  %208 = vmatprep.subr.bf16.mxu0 0
  %209 = vmatpush1.bf16.msra.mxu0 %v190
  %210 = vmatprep.subr.bf16.mxu0 0
  %211 = vmatpush1.bf16.msra.mxu0 %v191
  %212 = vmatprep.subr.bf16.mxu0 0
  %213 = vmatpush1.bf16.msra.mxu0 %v192
  %214 = vmatprep.subr.bf16.mxu0 0
  %215 = vmatpush1.bf16.msra.mxu0 %v193
  %216 = vmatprep.subr.bf16.mxu0 0
  %217 = vmatpush1.bf16.msra.mxu0 %v194
  %218 = vmatprep.subr.bf16.mxu0 0
  %219 = vmatpush1.bf16.msra.mxu0 %v195
  %220 = vmatprep.subr.bf16.mxu0 0
  %221 = vmatpush1.bf16.msra.mxu0 0
  %222 = vmatprep.subr.bf16.mxu0 0
  %223 = vmatpush1.bf16.msra.mxu0 0
  %224 = vmatprep.subr.bf16.mxu0 0
  %225 = vmatpush1.bf16.msra.mxu0 0
  %226 = vmatprep.subr.bf16.mxu0 0
  %227 = vmatpush1.bf16.msra.mxu0 0
  %228 = vmatprep.subr.bf16.mxu0 0
  %229 = vmatpush1.bf16.msra.mxu0 0
  %230 = vmatprep.subr.bf16.mxu0 0
  %231 = vmatpush1.bf16.msra.mxu0 0
  %232 = vmatprep.subr.bf16.mxu0 0
  %233 = vmatpush1.bf16.msra.mxu0 0
  %234 = vmatprep.subr.bf16.mxu0 0
  %235 = vmatpush1.bf16.msra.mxu0 0
  %236 = vmatprep.mubr.bf16.mxu0 0
  %237 = vmatmul.mubr.bf16.gmra.mrb[0].mxu0 %v140
  %v238 = vpop.f32.mrb[0].mxu0
  %v239 = vadd.f32 0.0, %v238
  %v240 = vpop.f32.mrb[0].mxu0
  %v241 = vpop.f32.mrb[0].mxu0
  %v242 = vadd.f32 0.0, %v241
  %v243 = vpop.f32.mrb[0].mxu0
  %244 = vmatprep.mubr.bf16.mxu0 0
  %245 = vmatmul.mubr.bf16.gmra.mrb[0].mxu0 %v141
  %v246 = vpop.f32.mrb[0].mxu0
  %v247 = vadd.f32 0.0, %v246
  %v248 = vpop.f32.mrb[0].mxu0
  %v249 = vpop.f32.mrb[0].mxu0
  %v250 = vadd.f32 0.0, %v249
  %v251 = vpop.f32.mrb[0].mxu0
  %252 = vmatprep.mubr.bf16.mxu0 0
  %253 = vmatmul.mubr.bf16.gmra.mrb[0].mxu0 %v142
  %v254 = vpop.f32.mrb[0].mxu0
  %v255 = vadd.f32 0.0, %v254
  %v256 = vpop.f32.mrb[0].mxu0
  %v257 = vpop.f32.mrb[0].mxu0
  %v258 = vadd.f32 0.0, %v257
  %v259 = vpop.f32.mrb[0].mxu0
  %260 = vmatprep.mubr.bf16.mxu0 0
  %261 = vmatmul.mubr.bf16.gmra.mrb[0].mxu0 %v143
  %v262 = vpop.f32.mrb[0].mxu0
  %v263 = vadd.f32 0.0, %v262
  %v264 = vpop.f32.mrb[0].mxu0
  %v265 = vpop.f32.mrb[0].mxu0
  %v266 = vadd.f32 0.0, %v265
  %v267 = vpop.f32.mrb[0].mxu0
  %268 = vmatprep.mubr.bf16.mxu0 0
  %269 = vmatmul.mubr.bf16.gmra.mrb[0].mxu0 %v144
  %v270 = vpop.f32.mrb[0].mxu0
  %v271 = vadd.f32 0.0, %v270
  %v272 = vpop.f32.mrb[0].mxu0
  %v273 = vpop.f32.mrb[0].mxu0
  %v274 = vadd.f32 0.0, %v273
  %v275 = vpop.f32.mrb[0].mxu0
  %276 = vmatprep.mubr.bf16.mxu0 0
  %277 = vmatmul.mubr.bf16.gmra.mrb[0].mxu0 %v145
  %v278 = vpop.f32.mrb[0].mxu0
  %v279 = vadd.f32 0.0, %v278
  %v280 = vpop.f32.mrb[0].mxu0
  %v281 = vpop.f32.mrb[0].mxu0
  %v282 = vadd.f32 0.0, %v281
  %v283 = vpop.f32.mrb[0].mxu0
  %284 = vmatprep.mubr.bf16.mxu0 0
  %285 = vmatmul.mubr.bf16.gmra.mrb[0].mxu0 %v146
  %v286 = vpop.f32.mrb[0].mxu0
  %v287 = vadd.f32 0.0, %v286
  %v288 = vpop.f32.mrb[0].mxu0
  %v289 = vpop.f32.mrb[0].mxu0
  %v290 = vadd.f32 0.0, %v289
  %v291 = vpop.f32.mrb[0].mxu0
  %292 = vmatprep.mubr.bf16.mxu0 0
  %293 = vmatmul.mubr.bf16.gmra.mrb[0].mxu0 %v147
  %v294 = vpop.f32.mrb[0].mxu0
  %v295 = vadd.f32 0.0, %v294
  %v296 = vpop.f32.mrb[0].mxu0
  %v297 = vpop.f32.mrb[0].mxu0
  %v298 = vadd.f32 0.0, %v297
  %v299 = vpop.f32.mrb[0].mxu0
  %300 = vdwg.mxu0
  %302 = vset.pattern.permute.xlu0 0
  %303 = vperm.xlu0 %302, %v43
  %v304 = vpop.permute.xlu0 %303
  %307 = vset.pattern.permute.xlu0 0
  %308 = vperm.xlu0 %307, %v44
  %v309 = vpop.permute.xlu0 %308
  %312 = vset.pattern.permute.xlu0 0
  %313 = vperm.xlu0 %312, %v45
  %v314 = vpop.permute.xlu0 %313
  %317 = vset.pattern.permute.xlu0 0
  %318 = vperm.xlu0 %317, %v46
  %v319 = vpop.permute.xlu0 %318
  %322 = vset.pattern.permute.xlu0 0
  %323 = vperm.xlu0 %322, %v47
  %v324 = vpop.permute.xlu0 %323
  %327 = vset.pattern.permute.xlu0 0
  %328 = vperm.xlu0 %327, %v48
  %v329 = vpop.permute.xlu0 %328
  %332 = vset.pattern.permute.xlu0 0
  %333 = vperm.xlu0 %332, %v49
  %v334 = vpop.permute.xlu0 %333
  %337 = vset.pattern.permute.xlu0 0
  %338 = vperm.xlu0 %337, %v50
  %v339 = vpop.permute.xlu0 %338
  %342 = vset.pattern.permute.xlu0 0
  %343 = vperm.xlu0 %342, %v51
  %v344 = vpop.permute.xlu0 %343
  %347 = vset.pattern.permute.xlu0 0
  %348 = vperm.xlu0 %347, %v52
  %v349 = vpop.permute.xlu0 %348
  %352 = vset.pattern.permute.xlu0 0
  %353 = vperm.xlu0 %352, %v53
  %v354 = vpop.permute.xlu0 %353
  %357 = vset.pattern.permute.xlu0 0
  %358 = vperm.xlu0 %357, %v54
  %v359 = vpop.permute.xlu0 %358
  %362 = vset.pattern.permute.xlu0 0
  %363 = vperm.xlu0 %362, %v55
  %v364 = vpop.permute.xlu0 %363
  %367 = vset.pattern.permute.xlu0 0
  %368 = vperm.xlu0 %367, %v56
  %v369 = vpop.permute.xlu0 %368
  %372 = vset.pattern.permute.xlu0 0
  %373 = vperm.xlu0 %372, %v57
  %v374 = vpop.permute.xlu0 %373
  %377 = vset.pattern.permute.xlu0 0
  %378 = vperm.xlu0 %377, %v58
  %v379 = vpop.permute.xlu0 %378
  %v381 = vmul.f32 %v304, %v239
  %v382 = vmul.f32 %v309, %v242
  %v383 = vmul.f32 %v314, %v247
  %v384 = vmul.f32 %v319, %v250
  %v385 = vmul.f32 %v324, %v255
  %v386 = vmul.f32 %v329, %v258
  %v387 = vmul.f32 %v334, %v263
  %v388 = vmul.f32 %v339, %v266
  %v389 = vmul.f32 %v344, %v271
  %v390 = vmul.f32 %v349, %v274
  %v391 = vmul.f32 %v354, %v279
  %v392 = vmul.f32 %v359, %v282
  %v393 = vmul.f32 %v364, %v287
  %v394 = vmul.f32 %v369, %v290
  %v395 = vmul.f32 %v374, %v295
  %v396 = vmul.f32 %v379, %v298
  %397 = vrot.lane.b32.xlu0 %v75, 16
  %v398 = vpop.permute.xlu0 %397
  %399 = vrot.lane.b32.xlu0 %v76, 16
  %v400 = vpop.permute.xlu0 %399
  %401 = vrot.lane.b32.xlu0 %v77, 16
  %v402 = vpop.permute.xlu0 %401
  %403 = vrot.lane.b32.xlu0 %v78, 16
  %v404 = vpop.permute.xlu0 %403
  %405 = vrot.lane.b32.xlu0 %v79, 16
  %v406 = vpop.permute.xlu0 %405
  %407 = vrot.lane.b32.xlu0 %v80, 16
  %v408 = vpop.permute.xlu0 %407
  %409 = vrot.lane.b32.xlu0 %v81, 16
  %v410 = vpop.permute.xlu0 %409
  %411 = vrot.lane.b32.xlu0 %v82, 16
  %v412 = vpop.permute.xlu0 %411
  %413 = vrot.lane.b32.xlu0 %v83, 16
  %v414 = vpop.permute.xlu0 %413
  %415 = vrot.lane.b32.xlu0 %v84, 16
  %v416 = vpop.permute.xlu0 %415
  %417 = vrot.lane.b32.xlu0 %v85, 16
  %v418 = vpop.permute.xlu0 %417
  %419 = vrot.lane.b32.xlu0 %v86, 16
  %v420 = vpop.permute.xlu0 %419
  %421 = vrot.lane.b32.xlu0 %v87, 16
  %v422 = vpop.permute.xlu0 %421
  %423 = vrot.lane.b32.xlu0 %v88, 16
  %v424 = vpop.permute.xlu0 %423
  %425 = vrot.lane.b32.xlu0 %v89, 16
  %v426 = vpop.permute.xlu0 %425
  %427 = vrot.lane.b32.xlu0 %v90, 16
  %v428 = vpop.permute.xlu0 %427
  %v429 = vadd.f32 %v381, %v398
  %v430 = vadd.f32 %v382, %v400
  %v431 = vadd.f32 %v383, %v402
  %v432 = vadd.f32 %v384, %v404
  %v433 = vadd.f32 %v385, %v406
  %v434 = vadd.f32 %v386, %v408
  %v435 = vadd.f32 %v387, %v410
  %v436 = vadd.f32 %v388, %v412
  %v437 = vadd.f32 %v389, %v414
  %v438 = vadd.f32 %v390, %v416
  %v439 = vadd.f32 %v391, %v418
  %v440 = vadd.f32 %v392, %v420
  %v441 = vadd.f32 %v393, %v422
  %v442 = vadd.f32 %v394, %v424
  %v443 = vadd.f32 %v395, %v426
  %v444 = vadd.f32 %v396, %v428
  %v445 = vpack.c.bf16 %v430, %v429
  %v446 = vpack.c.bf16 %v432, %v431
  %v447 = vpack.c.bf16 %v434, %v433
  %v448 = vpack.c.bf16 %v436, %v435
  %v449 = vpack.c.bf16 %v438, %v437
  %v450 = vpack.c.bf16 %v440, %v439
  %v451 = vpack.c.bf16 %v442, %v441
  %v452 = vpack.c.bf16 %v444, %v443
  %v454 = vlaneseq
  %v455 = vshrl.u32 %v454, 7
  %v456 = vsub.s32 0, %v455
  %v457 = vrot.slane %v107, %v456
  %v475 = vunpack.c.l.b16 %v91
  %v476 = vunpack.c.l.b16 %v92
  %v477 = vunpack.c.l.b16 %v93
  %v478 = vunpack.c.l.b16 %v94
  %v479 = vunpack.c.l.b16 %v95
  %v480 = vunpack.c.l.b16 %v96
  %v481 = vunpack.c.l.b16 %v97
  %v482 = vunpack.c.l.b16 %v98
  %v483 = vunpack.c.l.b16 %v99
  %v484 = vunpack.c.l.b16 %v100
  %v485 = vunpack.c.l.b16 %v101
  %v486 = vunpack.c.l.b16 %v102
  %v487 = vunpack.c.l.b16 %v103
  %v488 = vunpack.c.l.b16 %v104
  %v489 = vunpack.c.l.b16 %v105
  %v490 = vunpack.c.l.b16 %v106
  %v491 = vpack.c.b16 %v476, %v475
  %v492 = vpack.c.b16 %v478, %v477
  %v493 = vpack.c.b16 %v480, %v479
  %v494 = vpack.c.b16 %v482, %v481
  %v495 = vpack.c.b16 %v484, %v483
  %v496 = vpack.c.b16 %v486, %v485
  %v497 = vpack.c.b16 %v488, %v487
  %v498 = vpack.c.b16 %v490, %v489
  %507 = vmatprep.subr.bf16.mxu0 0
  %508 = vmatpush1.bf16.msra.mxu0 %v491
  %509 = vmatprep.subr.bf16.mxu0 0
  %510 = vmatpush1.bf16.msra.mxu0 %v492
  %511 = vmatprep.subr.bf16.mxu0 0
  %512 = vmatpush1.bf16.msra.mxu0 %v493
  %513 = vmatprep.subr.bf16.mxu0 0
  %514 = vmatpush1.bf16.msra.mxu0 %v494
  %515 = vmatprep.subr.bf16.mxu0 0
  %516 = vmatpush1.bf16.msra.mxu0 %v495
  %517 = vmatprep.subr.bf16.mxu0 0
  %518 = vmatpush1.bf16.msra.mxu0 %v496
  %519 = vmatprep.subr.bf16.mxu0 0
  %520 = vmatpush1.bf16.msra.mxu0 %v497
  %521 = vmatprep.subr.bf16.mxu0 0
  %522 = vmatpush1.bf16.msra.mxu0 %v498
  %523 = vmatprep.subr.bf16.mxu0 0
  %524 = vmatpush1.bf16.msra.mxu0 0
  %525 = vmatprep.subr.bf16.mxu0 0
  %526 = vmatpush1.bf16.msra.mxu0 0
  %527 = vmatprep.subr.bf16.mxu0 0
  %528 = vmatpush1.bf16.msra.mxu0 0
  %529 = vmatprep.subr.bf16.mxu0 0
  %530 = vmatpush1.bf16.msra.mxu0 0
  %531 = vmatprep.subr.bf16.mxu0 0
  %532 = vmatpush1.bf16.msra.mxu0 0
  %533 = vmatprep.subr.bf16.mxu0 0
  %534 = vmatpush1.bf16.msra.mxu0 0
  %535 = vmatprep.subr.bf16.mxu0 0
  %536 = vmatpush1.bf16.msra.mxu0 0
  %537 = vmatprep.subr.bf16.mxu0 0
  %538 = vmatpush1.bf16.msra.mxu0 0
  %539 = vmatprep.mubr.bf16.mxu0 0
  %540 = vmatmul.mubr.bf16.gmra.mrb[0].mxu0 %v445
  %v541 = vpop.f32.mrb[0].mxu0
  %v542 = vadd.f32 %v457, %v541
  %v543 = vpop.f32.mrb[0].mxu0
  %v544 = vpop.f32.mrb[0].mxu0
  %v545 = vadd.f32 %v457, %v544
  %v546 = vpop.f32.mrb[0].mxu0
  %547 = vmatprep.mubr.bf16.mxu0 0
  %548 = vmatmul.mubr.bf16.gmra.mrb[0].mxu0 %v446
  %v549 = vpop.f32.mrb[0].mxu0
  %v550 = vadd.f32 %v457, %v549
  %v551 = vpop.f32.mrb[0].mxu0
  %v552 = vpop.f32.mrb[0].mxu0
  %v553 = vadd.f32 %v457, %v552
  %v554 = vpop.f32.mrb[0].mxu0
  %555 = vmatprep.mubr.bf16.mxu0 0
  %556 = vmatmul.mubr.bf16.gmra.mrb[0].mxu0 %v447
  %v557 = vpop.f32.mrb[0].mxu0
  %v558 = vadd.f32 %v457, %v557
  %v559 = vpop.f32.mrb[0].mxu0
  %v560 = vpop.f32.mrb[0].mxu0
  %v561 = vadd.f32 %v457, %v560
  %v562 = vpop.f32.mrb[0].mxu0
  %563 = vmatprep.mubr.bf16.mxu0 0
  %564 = vmatmul.mubr.bf16.gmra.mrb[0].mxu0 %v448
  %v565 = vpop.f32.mrb[0].mxu0
  %v566 = vadd.f32 %v457, %v565
  %v567 = vpop.f32.mrb[0].mxu0
  %v568 = vpop.f32.mrb[0].mxu0
  %v569 = vadd.f32 %v457, %v568
  %v570 = vpop.f32.mrb[0].mxu0
  %571 = vmatprep.mubr.bf16.mxu0 0
  %572 = vmatmul.mubr.bf16.gmra.mrb[0].mxu0 %v449
  %v573 = vpop.f32.mrb[0].mxu0
  %v574 = vadd.f32 %v457, %v573
  %v575 = vpop.f32.mrb[0].mxu0
  %v576 = vpop.f32.mrb[0].mxu0
  %v577 = vadd.f32 %v457, %v576
  %v578 = vpop.f32.mrb[0].mxu0
  %579 = vmatprep.mubr.bf16.mxu0 0
  %580 = vmatmul.mubr.bf16.gmra.mrb[0].mxu0 %v450
  %v581 = vpop.f32.mrb[0].mxu0
  %v582 = vadd.f32 %v457, %v581
  %v583 = vpop.f32.mrb[0].mxu0
  %v584 = vpop.f32.mrb[0].mxu0
  %v585 = vadd.f32 %v457, %v584
  %v586 = vpop.f32.mrb[0].mxu0
  %587 = vmatprep.mubr.bf16.mxu0 0
  %588 = vmatmul.mubr.bf16.gmra.mrb[0].mxu0 %v451
  %v589 = vpop.f32.mrb[0].mxu0
  %v590 = vadd.f32 %v457, %v589
  %v591 = vpop.f32.mrb[0].mxu0
  %v592 = vpop.f32.mrb[0].mxu0
  %v593 = vadd.f32 %v457, %v592
  %v594 = vpop.f32.mrb[0].mxu0
  %595 = vmatprep.mubr.bf16.mxu0 0
  %596 = vmatmul.mubr.bf16.gmra.mrb[0].mxu0 %v452
  %v597 = vpop.f32.mrb[0].mxu0
  %v598 = vadd.f32 %v457, %v597
  %v599 = vpop.f32.mrb[0].mxu0
  %v600 = vpop.f32.mrb[0].mxu0
  %v601 = vadd.f32 %v457, %v600
  %v602 = vpop.f32.mrb[0].mxu0
  %603 = vdwg.mxu0
  %v604 = vmax.f32 %v542, 0.0
  %v605 = vmax.f32 %v545, 0.0
  %v606 = vmax.f32 %v550, 0.0
  %v607 = vmax.f32 %v553, 0.0
  %v608 = vmax.f32 %v558, 0.0
  %v609 = vmax.f32 %v561, 0.0
  %v610 = vmax.f32 %v566, 0.0
  %v611 = vmax.f32 %v569, 0.0
  %v612 = vmax.f32 %v574, 0.0
  %v613 = vmax.f32 %v577, 0.0
  %v614 = vmax.f32 %v582, 0.0
  %v615 = vmax.f32 %v585, 0.0
  %v616 = vmax.f32 %v590, 0.0
  %v617 = vmax.f32 %v593, 0.0
  %v618 = vmax.f32 %v598, 0.0
  %v619 = vmax.f32 %v601, 0.0
  %v620 = vpack.c.bf16 %v605, %v604
  %v621 = vpack.c.bf16 %v607, %v606
  %v622 = vpack.c.bf16 %v609, %v608
  %v623 = vpack.c.bf16 %v611, %v610
  %v624 = vpack.c.bf16 %v613, %v612
  %v625 = vpack.c.bf16 %v615, %v614
  %v626 = vpack.c.bf16 %v617, %v616
  %v627 = vpack.c.bf16 %v619, %v618
  %v628 = vld [vmem:[%s5] sm:$0xf]
  %v629 = vld [vmem:[%s5 + $0x4] sm:$0xf]
  %v630 = vld [vmem:[%s5 + $0x8] sm:$0xf]
  %v631 = vld [vmem:[%s5 + $0xc] sm:$0xf]
  %v632 = vld [vmem:[%s5 + $0x10] sm:$0xf]
  %v633 = vld [vmem:[%s5 + $0x14] sm:$0xf]
  %v634 = vld [vmem:[%s5 + $0x18] sm:$0xf]
  %v635 = vld [vmem:[%s5 + $0x1c] sm:$0xf]
  %v636 = vld [vmem:[%s5 + $0x20] sm:$0xf]
  %v637 = vld [vmem:[%s5 + $0x24] sm:$0xf]
  %v638 = vld [vmem:[%s5 + $0x28] sm:$0xf]
  %v639 = vld [vmem:[%s5 + $0x2c] sm:$0xf]
  %v640 = vld [vmem:[%s5 + $0x30] sm:$0xf]
  %v641 = vld [vmem:[%s5 + $0x34] sm:$0xf]
  %v642 = vld [vmem:[%s5 + $0x38] sm:$0xf]
  %v643 = vld [vmem:[%s5 + $0x3c] sm:$0xf]
  %v644 = vld [vmem:[%s6] sm:$0x1]
  %645 = vmatprep.subr.bf16.mxu0 0
  %646 = vmatpush1.bf16.msra.mxu0 %v620
  %647 = vmatprep.subr.bf16.mxu0 0
  %648 = vmatpush1.bf16.msra.mxu0 %v621
  %649 = vmatprep.subr.bf16.mxu0 0
  %650 = vmatpush1.bf16.msra.mxu0 %v622
  %651 = vmatprep.subr.bf16.mxu0 0
  %652 = vmatpush1.bf16.msra.mxu0 %v623
  %653 = vmatprep.subr.bf16.mxu0 0
  %654 = vmatpush1.bf16.msra.mxu0 %v624
  %655 = vmatprep.subr.bf16.mxu0 0
  %656 = vmatpush1.bf16.msra.mxu0 %v625
  %657 = vmatprep.subr.bf16.mxu0 0
  %658 = vmatpush1.bf16.msra.mxu0 %v626
  %659 = vmatprep.subr.bf16.mxu0 0
  %660 = vmatpush1.bf16.msra.mxu0 %v627
  %661 = vmatprep.subr.bf16.mxu0 0
  %662 = vmatpush1.bf16.msra.mxu0 0
  %663 = vmatprep.subr.bf16.mxu0 0
  %664 = vmatpush1.bf16.msra.mxu0 0
  %665 = vmatprep.subr.bf16.mxu0 0
  %666 = vmatpush1.bf16.msra.mxu0 0
  %667 = vmatprep.subr.bf16.mxu0 0
  %668 = vmatpush1.bf16.msra.mxu0 0
  %669 = vmatprep.subr.bf16.mxu0 0
  %670 = vmatpush1.bf16.msra.mxu0 0
  %671 = vmatprep.subr.bf16.mxu0 0
  %672 = vmatpush1.bf16.msra.mxu0 0
  %673 = vmatprep.subr.bf16.mxu0 0
  %674 = vmatpush1.bf16.msra.mxu0 0
  %675 = vmatprep.subr.bf16.mxu0 0
  %676 = vmatpush1.bf16.msra.mxu0 0
  %677 = vmatprep.mubr.bf16.mxu0 0
  %678 = vmatmul.mubr.bf16.gmra.mrb[0].mxu0 %v140
  %v679 = vpop.f32.mrb[0].mxu0
  %v680 = vadd.f32 0.0, %v679
  %v681 = vpop.f32.mrb[0].mxu0
  %v682 = vpop.f32.mrb[0].mxu0
  %v683 = vadd.f32 0.0, %v682
  %v684 = vpop.f32.mrb[0].mxu0
  %685 = vmatprep.mubr.bf16.mxu0 0
  %686 = vmatmul.mubr.bf16.gmra.mrb[0].mxu0 %v141
  %v687 = vpop.f32.mrb[0].mxu0
  %v688 = vadd.f32 0.0, %v687
  %v689 = vpop.f32.mrb[0].mxu0
  %v690 = vpop.f32.mrb[0].mxu0
  %v691 = vadd.f32 0.0, %v690
  %v692 = vpop.f32.mrb[0].mxu0
  %693 = vmatprep.mubr.bf16.mxu0 0
  %694 = vmatmul.mubr.bf16.gmra.mrb[0].mxu0 %v142
  %v695 = vpop.f32.mrb[0].mxu0
  %v696 = vadd.f32 0.0, %v695
  %v697 = vpop.f32.mrb[0].mxu0
  %v698 = vpop.f32.mrb[0].mxu0
  %v699 = vadd.f32 0.0, %v698
  %v700 = vpop.f32.mrb[0].mxu0
  %701 = vmatprep.mubr.bf16.mxu0 0
  %702 = vmatmul.mubr.bf16.gmra.mrb[0].mxu0 %v143
  %v703 = vpop.f32.mrb[0].mxu0
  %v704 = vadd.f32 0.0, %v703
  %v705 = vpop.f32.mrb[0].mxu0
  %v706 = vpop.f32.mrb[0].mxu0
  %v707 = vadd.f32 0.0, %v706
  %v708 = vpop.f32.mrb[0].mxu0
  %709 = vmatprep.mubr.bf16.mxu0 0
  %710 = vmatmul.mubr.bf16.gmra.mrb[0].mxu0 %v144
  %v711 = vpop.f32.mrb[0].mxu0
  %v712 = vadd.f32 0.0, %v711
  %v713 = vpop.f32.mrb[0].mxu0
  %v714 = vpop.f32.mrb[0].mxu0
  %v715 = vadd.f32 0.0, %v714
  %v716 = vpop.f32.mrb[0].mxu0
  %717 = vmatprep.mubr.bf16.mxu0 0
  %718 = vmatmul.mubr.bf16.gmra.mrb[0].mxu0 %v145
  %v719 = vpop.f32.mrb[0].mxu0
  %v720 = vadd.f32 0.0, %v719
  %v721 = vpop.f32.mrb[0].mxu0
  %v722 = vpop.f32.mrb[0].mxu0
  %v723 = vadd.f32 0.0, %v722
  %v724 = vpop.f32.mrb[0].mxu0
  %725 = vmatprep.mubr.bf16.mxu0 0
  %726 = vmatmul.mubr.bf16.gmra.mrb[0].mxu0 %v146
  %v727 = vpop.f32.mrb[0].mxu0
  %v728 = vadd.f32 0.0, %v727
  %v729 = vpop.f32.mrb[0].mxu0
  %v730 = vpop.f32.mrb[0].mxu0
  %v731 = vadd.f32 0.0, %v730
  %v732 = vpop.f32.mrb[0].mxu0
  %733 = vmatprep.mubr.bf16.mxu0 0
  %734 = vmatmul.mubr.bf16.gmra.mrb[0].mxu0 %v147
  %v735 = vpop.f32.mrb[0].mxu0
  %v736 = vadd.f32 0.0, %v735
  %v737 = vpop.f32.mrb[0].mxu0
  %v738 = vpop.f32.mrb[0].mxu0
  %v739 = vadd.f32 0.0, %v738
  %v740 = vpop.f32.mrb[0].mxu0
  %741 = vdwg.mxu0
  %v742 = vmul.f32 %v304, %v680
  %v743 = vmul.f32 %v309, %v683
  %v744 = vmul.f32 %v314, %v688
  %v745 = vmul.f32 %v319, %v691
  %v746 = vmul.f32 %v324, %v696
  %v747 = vmul.f32 %v329, %v699
  %v748 = vmul.f32 %v334, %v704
  %v749 = vmul.f32 %v339, %v707
  %v750 = vmul.f32 %v344, %v712
  %v751 = vmul.f32 %v349, %v715
  %v752 = vmul.f32 %v354, %v720
  %v753 = vmul.f32 %v359, %v723
  %v754 = vmul.f32 %v364, %v728
  %v755 = vmul.f32 %v369, %v731
  %v756 = vmul.f32 %v374, %v736
  %v757 = vmul.f32 %v379, %v739
  %758 = vrot.lane.b32.xlu0 %v604, 32
  %v759 = vpop.permute.xlu0 %758
  %760 = vrot.lane.b32.xlu0 %v605, 32
  %v761 = vpop.permute.xlu0 %760
  %762 = vrot.lane.b32.xlu0 %v606, 32
  %v763 = vpop.permute.xlu0 %762
  %764 = vrot.lane.b32.xlu0 %v607, 32
  %v765 = vpop.permute.xlu0 %764
  %766 = vrot.lane.b32.xlu0 %v608, 32
  %v767 = vpop.permute.xlu0 %766
  %768 = vrot.lane.b32.xlu0 %v609, 32
  %v769 = vpop.permute.xlu0 %768
  %770 = vrot.lane.b32.xlu0 %v610, 32
  %v771 = vpop.permute.xlu0 %770
  %772 = vrot.lane.b32.xlu0 %v611, 32
  %v773 = vpop.permute.xlu0 %772
  %774 = vrot.lane.b32.xlu0 %v612, 32
  %v775 = vpop.permute.xlu0 %774
  %776 = vrot.lane.b32.xlu0 %v613, 32
  %v777 = vpop.permute.xlu0 %776
  %778 = vrot.lane.b32.xlu0 %v614, 32
  %v779 = vpop.permute.xlu0 %778
  %780 = vrot.lane.b32.xlu0 %v615, 32
  %v781 = vpop.permute.xlu0 %780
  %782 = vrot.lane.b32.xlu0 %v616, 32
  %v783 = vpop.permute.xlu0 %782
  %784 = vrot.lane.b32.xlu0 %v617, 32
  %v785 = vpop.permute.xlu0 %784
  %786 = vrot.lane.b32.xlu0 %v618, 32
  %v787 = vpop.permute.xlu0 %786
  %788 = vrot.lane.b32.xlu0 %v619, 32
  %v789 = vpop.permute.xlu0 %788
  %v790 = vadd.f32 %v742, %v759
  %v791 = vadd.f32 %v743, %v761
  %v792 = vadd.f32 %v744, %v763
  %v793 = vadd.f32 %v745, %v765
  %v794 = vadd.f32 %v746, %v767
  %v795 = vadd.f32 %v747, %v769
  %v796 = vadd.f32 %v748, %v771
  %v797 = vadd.f32 %v749, %v773
  %v798 = vadd.f32 %v750, %v775
  %v799 = vadd.f32 %v751, %v777
  %v800 = vadd.f32 %v752, %v779
  %v801 = vadd.f32 %v753, %v781
  %v802 = vadd.f32 %v754, %v783
  %v803 = vadd.f32 %v755, %v785
  %v804 = vadd.f32 %v756, %v787
  %v805 = vadd.f32 %v757, %v789
  %v806 = vpack.c.bf16 %v791, %v790
  %v807 = vpack.c.bf16 %v793, %v792
  %v808 = vpack.c.bf16 %v795, %v794
  %v809 = vpack.c.bf16 %v797, %v796
  %v810 = vpack.c.bf16 %v799, %v798
  %v811 = vpack.c.bf16 %v801, %v800
  %v812 = vpack.c.bf16 %v803, %v802
  %v813 = vpack.c.bf16 %v805, %v804
  %v815 = vlaneseq
  %v816 = vshrl.u32 %v815, 7
  %v817 = vsub.s32 0, %v816
  %v818 = vrot.slane %v644, %v817
  %v836 = vunpack.c.l.b16 %v628
  %v837 = vunpack.c.l.b16 %v629
  %v838 = vunpack.c.l.b16 %v630
  %v839 = vunpack.c.l.b16 %v631
  %v840 = vunpack.c.l.b16 %v632
  %v841 = vunpack.c.l.b16 %v633
  %v842 = vunpack.c.l.b16 %v634
  %v843 = vunpack.c.l.b16 %v635
  %v844 = vunpack.c.l.b16 %v636
  %v845 = vunpack.c.l.b16 %v637
  %v846 = vunpack.c.l.b16 %v638
  %v847 = vunpack.c.l.b16 %v639
  %v848 = vunpack.c.l.b16 %v640
  %v849 = vunpack.c.l.b16 %v641
  %v850 = vunpack.c.l.b16 %v642
  %v851 = vunpack.c.l.b16 %v643
  %v852 = vpack.c.b16 %v837, %v836
  %v853 = vpack.c.b16 %v839, %v838
  %v854 = vpack.c.b16 %v841, %v840
  %v855 = vpack.c.b16 %v843, %v842
  %v856 = vpack.c.b16 %v845, %v844
  %v857 = vpack.c.b16 %v847, %v846
  %v858 = vpack.c.b16 %v849, %v848
  %v859 = vpack.c.b16 %v851, %v850
  %868 = vmatprep.subr.bf16.mxu0 0
  %869 = vmatpush1.bf16.msra.mxu0 %v852
  %870 = vmatprep.subr.bf16.mxu0 0
  %871 = vmatpush1.bf16.msra.mxu0 %v853
  %872 = vmatprep.subr.bf16.mxu0 0
  %873 = vmatpush1.bf16.msra.mxu0 %v854
  %874 = vmatprep.subr.bf16.mxu0 0
  %875 = vmatpush1.bf16.msra.mxu0 %v855
  %876 = vmatprep.subr.bf16.mxu0 0
  %877 = vmatpush1.bf16.msra.mxu0 %v856
  %878 = vmatprep.subr.bf16.mxu0 0
  %879 = vmatpush1.bf16.msra.mxu0 %v857
  %880 = vmatprep.subr.bf16.mxu0 0
  %881 = vmatpush1.bf16.msra.mxu0 %v858
  %882 = vmatprep.subr.bf16.mxu0 0
  %883 = vmatpush1.bf16.msra.mxu0 %v859
  %884 = vmatprep.subr.bf16.mxu0 0
  %885 = vmatpush1.bf16.msra.mxu0 0
  %886 = vmatprep.subr.bf16.mxu0 0
  %887 = vmatpush1.bf16.msra.mxu0 0
  %888 = vmatprep.subr.bf16.mxu0 0
  %889 = vmatpush1.bf16.msra.mxu0 0
  %890 = vmatprep.subr.bf16.mxu0 0
  %891 = vmatpush1.bf16.msra.mxu0 0
  %892 = vmatprep.subr.bf16.mxu0 0
  %893 = vmatpush1.bf16.msra.mxu0 0
  %894 = vmatprep.subr.bf16.mxu0 0
  %895 = vmatpush1.bf16.msra.mxu0 0
  %896 = vmatprep.subr.bf16.mxu0 0
  %897 = vmatpush1.bf16.msra.mxu0 0
  %898 = vmatprep.subr.bf16.mxu0 0
  %899 = vmatpush1.bf16.msra.mxu0 0
  %900 = vmatprep.mubr.bf16.mxu0 0
  %901 = vmatmul.mubr.bf16.gmra.mrb[0].mxu0 %v806
  %v902 = vpop.f32.mrb[0].mxu0
  %v903 = vadd.f32 %v818, %v902
  %v904 = vpop.f32.mrb[0].mxu0
  %v905 = vpop.f32.mrb[0].mxu0
  %v906 = vadd.f32 %v818, %v905
  %v907 = vpop.f32.mrb[0].mxu0
  %908 = vmatprep.mubr.bf16.mxu0 0
  %909 = vmatmul.mubr.bf16.gmra.mrb[0].mxu0 %v807
  %v910 = vpop.f32.mrb[0].mxu0
  %v911 = vadd.f32 %v818, %v910
  %v912 = vpop.f32.mrb[0].mxu0
  %v913 = vpop.f32.mrb[0].mxu0
  %v914 = vadd.f32 %v818, %v913
  %v915 = vpop.f32.mrb[0].mxu0
  %916 = vmatprep.mubr.bf16.mxu0 0
  %917 = vmatmul.mubr.bf16.gmra.mrb[0].mxu0 %v808
  %v918 = vpop.f32.mrb[0].mxu0
  %v919 = vadd.f32 %v818, %v918
  %v920 = vpop.f32.mrb[0].mxu0
  %v921 = vpop.f32.mrb[0].mxu0
  %v922 = vadd.f32 %v818, %v921
  %v923 = vpop.f32.mrb[0].mxu0
  %924 = vmatprep.mubr.bf16.mxu0 0
  %925 = vmatmul.mubr.bf16.gmra.mrb[0].mxu0 %v809
  %v926 = vpop.f32.mrb[0].mxu0
  %v927 = vadd.f32 %v818, %v926
  %v928 = vpop.f32.mrb[0].mxu0
  %v929 = vpop.f32.mrb[0].mxu0
  %v930 = vadd.f32 %v818, %v929
  %v931 = vpop.f32.mrb[0].mxu0
  %932 = vmatprep.mubr.bf16.mxu0 0
  %933 = vmatmul.mubr.bf16.gmra.mrb[0].mxu0 %v810
  %v934 = vpop.f32.mrb[0].mxu0
  %v935 = vadd.f32 %v818, %v934
  %v936 = vpop.f32.mrb[0].mxu0
  %v937 = vpop.f32.mrb[0].mxu0
  %v938 = vadd.f32 %v818, %v937
  %v939 = vpop.f32.mrb[0].mxu0
  %940 = vmatprep.mubr.bf16.mxu0 0
  %941 = vmatmul.mubr.bf16.gmra.mrb[0].mxu0 %v811
  %v942 = vpop.f32.mrb[0].mxu0
  %v943 = vadd.f32 %v818, %v942
  %v944 = vpop.f32.mrb[0].mxu0
  %v945 = vpop.f32.mrb[0].mxu0
  %v946 = vadd.f32 %v818, %v945
  %v947 = vpop.f32.mrb[0].mxu0
  %948 = vmatprep.mubr.bf16.mxu0 0
  %949 = vmatmul.mubr.bf16.gmra.mrb[0].mxu0 %v812
  %v950 = vpop.f32.mrb[0].mxu0
  %v951 = vadd.f32 %v818, %v950
  %v952 = vpop.f32.mrb[0].mxu0
  %v953 = vpop.f32.mrb[0].mxu0
  %v954 = vadd.f32 %v818, %v953
  %v955 = vpop.f32.mrb[0].mxu0
  %956 = vmatprep.mubr.bf16.mxu0 0
  %957 = vmatmul.mubr.bf16.gmra.mrb[0].mxu0 %v813
  %v958 = vpop.f32.mrb[0].mxu0
  %v959 = vadd.f32 %v818, %v958
  %v960 = vpop.f32.mrb[0].mxu0
  %v961 = vpop.f32.mrb[0].mxu0
  %v962 = vadd.f32 %v818, %v961
  %v963 = vpop.f32.mrb[0].mxu0
  %964 = vdwg.mxu0
  %965 = vst [vmem:[%s7] sm:$0xff] %v903
  %966 = vst [vmem:[%s7 + $0x8] sm:$0xff] %v906
  %967 = vst [vmem:[%s7 + $0x10] sm:$0xff] %v911
  %968 = vst [vmem:[%s7 + $0x18] sm:$0xff] %v914
  %969 = vst [vmem:[%s7 + $0x20] sm:$0xff] %v919
  %970 = vst [vmem:[%s7 + $0x28] sm:$0xff] %v922
  %971 = vst [vmem:[%s7 + $0x30] sm:$0xff] %v927
  %972 = vst [vmem:[%s7 + $0x38] sm:$0xff] %v930
  %973 = vst [vmem:[%s7 + $0x40] sm:$0xff] %v935
  %974 = vst [vmem:[%s7 + $0x48] sm:$0xff] %v938
  %975 = vst [vmem:[%s7 + $0x50] sm:$0xff] %v943
  %976 = vst [vmem:[%s7 + $0x58] sm:$0xff] %v946
  %977 = vst [vmem:[%s7 + $0x60] sm:$0xff] %v951
  %978 = vst [vmem:[%s7 + $0x68] sm:$0xff] %v954
  %979 = vst [vmem:[%s7 + $0x70] sm:$0xff] %v959
  %980 = vst [vmem:[%s7 + $0x78] sm:$0xff] %v962
  // Predicated region
  $region30: #{graphsage_forward.1} parent=0 // pred_check
    _
  $region31: #{graphsage_forward.1} parent=0 // pred_check_branch
    %982 = sbr.rel (0) target = $region33
  $region32: #{graphsage_forward.1} parent=0 // pred_region
    _
  $region33: #{graphsage_forward.1} parent=0 // pred_fallthru
    _
  // Predicated region
  $region34: #{graphsage_forward.1} parent=0 // pred_check
    _
  $region35: #{graphsage_forward.1} parent=0 // pred_check_branch
    %984 = sbr.rel (0) target = $region37
  $region36: #{graphsage_forward.1} parent=0 // pred_region
    _
  $region37: #{graphsage_forward.1} parent=0 // pred_fallthru
    _

</llo_original>
